<compile_context>
chip_gen: v6e
topology: v6e:2x2x1
jax: 0.10.0
libtpu: 0.0.40
codegen_flags: <defaults>
</compile_context>

<pallas_src>
import functools
import numpy as np
import jax
import jax.numpy as jnp
from jax.experimental import pallas as pl
from jax.experimental.pallas import tpu as pltpu


# ----------------------------------------------------------------------------
# Tiling policy (shared between weight prep and the matmul call)
# ----------------------------------------------------------------------------
def _round_up(x, m):
    return (x + m - 1) // m * m


def _choose_n(N):
    """Pad N to a 128 multiple; largest 128-multiple tile <= 1024 that divides."""
    Np = _round_up(N, 128)
    for tn in range(1024, 127, -128):
        if Np % tn == 0:
            return Np, tn
    return Np, 128


def _choose_k(K):
    """Pad K to a 128 multiple; single full-K pass when it fits, else tile."""
    Kp = _round_up(K, 128)
    if Kp <= 2048:
        return Kp, Kp                      # single pass, no accumulator needed
    for tk in range(2048, 511, -128):
        if Kp % tk == 0:
            return Kp, tk
    Kp = _round_up(Kp, 512)
    return Kp, 512


def _vmem_limit_bytes():
    # Generation-aware scoped-VMEM budget (96 MiB on 128-MiB parts, 48 MiB on
    # v7x's 64-MiB parts, conservative 32 MiB fallback).
    try:
        info = pltpu.get_tpu_info()
        cap = getattr(info, "vmem_capacity_bytes", None)
        if cap:
            return int(min(cap * 3 // 4, 96 * 1024 * 1024))
    except Exception:
        pass
    return 32 * 1024 * 1024


_VMEM_LIMIT = _vmem_limit_bytes()


# ----------------------------------------------------------------------------
# Pallas fused matmul kernel:  out = epilogue(act(X @ W + bias), extra)
#   X: (M,K) bf16   W: (K,N) bf16   acc/epilogue: f32   out: bf16
# ----------------------------------------------------------------------------
def _make_mm_kernel(*, has_bias, has_extra, multi_k, activation, epilogue):

    def _epilogue(acc, b_ref, e_ref, o_ref):
        y = acc
        if has_bias:
            y = y + b_ref[...]
        if activation == "relu":
            y = jnp.maximum(y, 0.0)
        elif activation == "lrelu":        # InPlaceABNSync default (slope 0.01)
            y = jnp.where(y > 0, y, 0.01 * y)
        if has_extra:
            e = e_ref[...].astype(jnp.float32)
            if epilogue == "add_relu":     # residual add + ReLU (bottleneck)
                y = jnp.maximum(y + e, 0.0)
            elif epilogue == "mul_sigmoid":  # x * sigmoid(extra)
                y = y * pl.reciprocal(1.0 + jnp.exp(-e), approx=True)
        o_ref[...] = y.astype(o_ref.dtype)

    if multi_k:
        def kernel(*refs):
            x_ref, w_ref = refs[0], refs[1]
            idx = 2
            b_ref = None
            if has_bias:
                b_ref = refs[idx]; idx += 1
            e_ref = None
            if has_extra:
                e_ref = refs[idx]; idx += 1
            o_ref = refs[idx]
            acc_ref = refs[idx + 1]

            @pl.when(pl.program_id(2) == 0)
            def _():
                acc_ref[...] = jnp.zeros_like(acc_ref)

            acc_ref[...] += jnp.dot(x_ref[...], w_ref[...],
                                    preferred_element_type=jnp.float32)

            @pl.when(pl.program_id(2) == pl.num_programs(2) - 1)
            def _():
                _epilogue(acc_ref[...], b_ref, e_ref, o_ref)
    else:
        def kernel(*refs):
            x_ref, w_ref = refs[0], refs[1]
            idx = 2
            b_ref = None
            if has_bias:
                b_ref = refs[idx]; idx += 1
            e_ref = None
            if has_extra:
                e_ref = refs[idx]; idx += 1
            o_ref = refs[idx]
            acc = jnp.dot(x_ref[...], w_ref[...],
                          preferred_element_type=jnp.float32)
            _epilogue(acc, b_ref, e_ref, o_ref)

    return kernel


def _mm_bias_act(cols, w2d, bias, extra, *, K, cout, activation, epilogue):
    """cols: (M,K or Kp) bf16, w2d: (Kp,Np) bf16 pre-padded, bias: (1,Np) f32 or
    None, extra: (M,cout) bf16 or None (requires cout % 128 == 0).
    Returns (M, Np) bf16 — caller slices channels if cout != Np."""
    M0, Kc = cols.shape
    Kp, tk = _choose_k(K)
    Np, tn = _choose_n(cout)
    assert w2d.shape == (Kp, Np), (w2d.shape, Kp, Np)

    # K padding only when K is not already a 128-multiple (stem conv1, GCN taps).
    if Kc != Kp:
        cols = jnp.pad(cols, ((0, 0), (0, Kp - Kc)))

    # Tiny-M convs (PSP priors): round M up to a sublane multiple, cheaply.
    M = M0
    if M < 256 and M % 8 != 0:
        M = _round_up(M, 8)
        cols = jnp.pad(cols, ((0, M - M0), (0, 0)))
        if extra is not None:
            extra = jnp.pad(extra, ((0, M - M0), (0, 0)))

    tm = 256 if M >= 256 else M
    gm = pl.cdiv(M, tm)
    gn = Np // tn
    nk = Kp // tk
    multi_k = nk > 1

    # Give v7x's second TensorCore something to do on single-block grids.
    if gm == 1 and gn == 1:
        if tn % 256 == 0:
            tn //= 2
            gn = 2
        elif tm % 16 == 0 and tm >= 32:
            tm //= 2
            gm = 2

    has_bias = bias is not None
    has_extra = extra is not None
    if has_extra:
        assert cout == Np and extra.shape == (M, cout), (extra.shape, M, cout)

    if multi_k:
        grid = (gm, gn, nk)
        x_map = lambda i, j, k: (i, k)
        w_map = lambda i, j, k: (k, j)
        b_map = lambda i, j, k: (0, j)
        e_map = lambda i, j, k: (i, j)
        o_map = lambda i, j, k: (i, j)
        scratch = [pltpu.VMEM((tm, tn), jnp.float32)]
        dims = ("parallel", "parallel", "arbitrary")
    else:
        grid = (gm, gn)
        x_map = lambda i, j: (i, 0)
        w_map = lambda i, j: (0, j)
        b_map = lambda i, j: (0, j)
        e_map = lambda i, j: (i, j)
        o_map = lambda i, j: (i, j)
        scratch = []
        dims = ("parallel", "parallel")

    in_specs = [pl.BlockSpec((tm, tk), x_map),
                pl.BlockSpec((tk, tn), w_map)]
    operands = [cols, w2d]
    if has_bias:
        in_specs.append(pl.BlockSpec((1, tn), b_map))
        operands.append(bias)
    if has_extra:
        in_specs.append(pl.BlockSpec((tm, tn), e_map))
        operands.append(extra)

    kernel = _make_mm_kernel(has_bias=has_bias, has_extra=has_extra,
                             multi_k=multi_k, activation=activation,
                             epilogue=epilogue)
    out = pl.pallas_call(
        kernel,
        out_shape=jax.ShapeDtypeStruct((M, Np), jnp.bfloat16),
        grid_spec=pltpu.PrefetchScalarGridSpec(
            num_scalar_prefetch=0,
            grid=grid,
            in_specs=in_specs,
            out_specs=pl.BlockSpec((tm, tn), o_map),
            scratch_shapes=scratch),
        compiler_params=pltpu.CompilerParams(
            dimension_semantics=dims,
            vmem_limit_bytes=_VMEM_LIMIT),
    )(*operands)

    if M != M0:
        out = out[:M0]
    return out


# ----------------------------------------------------------------------------
# Conv glue (im2col in bf16; 1x1 convs skip im2col entirely)
# ----------------------------------------------------------------------------
def _im2col(x, kh, kw, stride, padding, dilation):
    N, H, W, C = x.shape
    ph, pw = padding
    xp = jnp.pad(x, ((0, 0), (ph, ph), (pw, pw), (0, 0)))
    Hp, Wp = H + 2 * ph, W + 2 * pw
    Ho = (Hp - dilation * (kh - 1) - 1) // stride + 1
    Wo = (Wp - dilation * (kw - 1) - 1) // stride + 1
    cols = []
    for ih in range(kh):
        hs = ih * dilation
        for iw in range(kw):
            ws = iw * dilation
            cols.append(xp[:, hs:hs + (Ho - 1) * stride + 1:stride,
                              ws:ws + (Wo - 1) * stride + 1:stride, :])
    cols = jnp.concatenate(cols, axis=-1)
    return cols.reshape(N * Ho * Wo, kh * kw * C), (N, Ho, Wo)


@functools.partial(jax.jit, static_argnames=(
    "kh", "kw", "cout", "stride", "ph", "pw", "dilation", "act", "epilogue",
    "out_padded"))
def _conv2d_impl(x, w2d, bias, extra, *, kh, kw, cout, stride, ph, pw,
                 dilation, act, epilogue, out_padded):
    xb = x.astype(jnp.bfloat16)
    if kh == 1 and kw == 1 and dilation == 1 and ph == 0 and pw == 0:
        if stride != 1:
            xb = xb[:, ::stride, ::stride, :]
        Nb, Ho, Wo, C = xb.shape
        cols = xb.reshape(Nb * Ho * Wo, C)
    else:
        cols, (Nb, Ho, Wo) = _im2col(xb, kh, kw, stride, (ph, pw), dilation)
    M, K = cols.shape
    e2 = None if extra is None else extra.reshape(M, cout).astype(jnp.bfloat16)
    y = _mm_bias_act(cols, w2d, bias, e2, K=kh * kw * x.shape[-1], cout=cout,
                     activation=act, epilogue=epilogue)
    if not out_padded and y.shape[1] != cout:
        y = y[:, :cout]
    return y.reshape(Nb, Ho, Wo, y.shape[1])


def conv2d(x, cw, *, act="none", stride=1, padding=0, dilation=1,
           extra=None, epilogue="none", out_padded=False):
    if isinstance(padding, int):
        padding = (padding, padding)
    return _conv2d_impl(x, cw["w2d"], cw["b"], extra,
                        kh=cw["kh"], kw=cw["kw"], cout=cw["cout"],
                        stride=stride, ph=padding[0], pw=padding[1],
                        dilation=dilation, act=act, epilogue=epilogue,
                        out_padded=out_padded)


# ----------------------------------------------------------------------------
# Fused 1x1-chain Pallas kernels (decoder conv3a->conv3b->gate->conv4, layer7)
# ----------------------------------------------------------------------------
def _decoder_fused_kernel(xt_ref, xl_ref, xfg_ref, w3at_ref, w3al_ref, w3b_ref,
                          w4_ref, b4_ref, seg_ref, feat_ref):
    y1 = jnp.dot(xt_ref[...], w3at_ref[...], preferred_element_type=jnp.float32)
    y1 = y1 + jnp.dot(xl_ref[...], w3al_ref[...],
                      preferred_element_type=jnp.float32)
    y1 = jnp.where(y1 > 0, y1, 0.01 * y1)                 # InPlaceABNSync lrelu
    y2 = jnp.dot(y1.astype(jnp.bfloat16), w3b_ref[...],
                 preferred_element_type=jnp.float32)
    y2 = jnp.where(y2 > 0, y2, 0.01 * y2)
    gate = pl.reciprocal(1.0 + jnp.exp(-xfg_ref[...].astype(jnp.float32)),
                         approx=True)
    feat = y2 * gate
    feat_ref[...] = feat.astype(feat_ref.dtype)
    seg = jnp.dot(feat.astype(jnp.bfloat16), w4_ref[...],
                  preferred_element_type=jnp.float32) + b4_ref[...]
    seg_ref[...] = seg.astype(seg_ref.dtype)


@functools.partial(jax.jit, static_argnames=("num_classes",))
def _decoder_fused_impl(xt, xl, xfg, w3a_t, w3a_l, w3b, w4, b4, *, num_classes):
    N, H, W, _ = xt.shape
    M = N * H * W
    xt2 = xt.reshape(M, -1).astype(jnp.bfloat16)
    xl2 = xl.reshape(M, -1).astype(jnp.bfloat16)
    xfg2 = xfg.reshape(M, -1).astype(jnp.bfloat16)
    C1, C2, C3 = xt2.shape[1], xl2.shape[1], xfg2.shape[1]
    Cmid, Cp = w3b.shape[1], w4.shape[1]

    tm = 256 if M >= 256 else M
    gm = pl.cdiv(M, tm)
    if gm == 1 and tm % 16 == 0 and tm >= 32:   # feed v7x's second core
        tm //= 2
        gm = 2

    seg, feat = pl.pallas_call(
        _decoder_fused_kernel,
        out_shape=(jax.ShapeDtypeStruct((M, Cp), jnp.bfloat16),
                   jax.ShapeDtypeStruct((M, Cmid), jnp.bfloat16)),
        grid_spec=pltpu.PrefetchScalarGridSpec(
            num_scalar_prefetch=0, grid=(gm,),
            in_specs=[pl.BlockSpec((tm, C1), lambda i: (i, 0)),
                      pl.BlockSpec((tm, C2), lambda i: (i, 0)),
                      pl.BlockSpec((tm, C3), lambda i: (i, 0)),
                      pl.BlockSpec((C1, Cmid), lambda i: (0, 0)),
                      pl.BlockSpec((C2, Cmid), lambda i: (0, 0)),
                      pl.BlockSpec((Cmid, Cmid), lambda i: (0, 0)),
                      pl.BlockSpec((Cmid, Cp), lambda i: (0, 0)),
                      pl.BlockSpec((1, Cp), lambda i: (0, 0))],
            out_specs=[pl.BlockSpec((tm, Cp), lambda i: (i, 0)),
                       pl.BlockSpec((tm, Cmid), lambda i: (i, 0))]),
        compiler_params=pltpu.CompilerParams(
            dimension_semantics=("parallel",),
            vmem_limit_bytes=_VMEM_LIMIT),
    )(xt2, xl2, xfg2, w3a_t, w3a_l, w3b, w4, b4)

    return (seg[:, :num_classes].reshape(N, H, W, num_classes),
            feat.reshape(N, H, W, Cmid))


def _layer7_fused_kernel(xd_ref, xe_ref, wad_ref, wae_ref, wb_ref, b_ref, o_ref):
    y = jnp.dot(xd_ref[...], wad_ref[...], preferred_element_type=jnp.float32)
    y = y + jnp.dot(xe_ref[...], wae_ref[...],
                    preferred_element_type=jnp.float32)
    y = jnp.where(y > 0, y, 0.01 * y)                      # InPlaceABNSync lrelu
    o = jnp.dot(y.astype(jnp.bfloat16), wb_ref[...],
                preferred_element_type=jnp.float32) + b_ref[...]
    o_ref[...] = o.astype(o_ref.dtype)


@functools.partial(jax.jit, static_argnames=("num_classes",))
def _layer7_fused_impl(xd, xe, w7a_d, w7a_e, w7b, b7b, *, num_classes):
    N, H, W, _ = xd.shape
    M = N * H * W
    xd2 = xd.reshape(M, -1).astype(jnp.bfloat16)
    xe2 = xe.reshape(M, -1).astype(jnp.bfloat16)
    C1, C2 = xd2.shape[1], xe2.shape[1]
    Cmid, Cp = w7a_d.shape[1], w7b.shape[1]

    tm = 256 if M >= 256 else M
    gm = pl.cdiv(M, tm)
    if gm == 1 and tm % 16 == 0 and tm >= 32:
        tm //= 2
        gm = 2

    seg = pl.pallas_call(
        _layer7_fused_kernel,
        out_shape=jax.ShapeDtypeStruct((M, Cp), jnp.bfloat16),
        grid_spec=pltpu.PrefetchScalarGridSpec(
            num_scalar_prefetch=0, grid=(gm,),
            in_specs=[pl.BlockSpec((tm, C1), lambda i: (i, 0)),
                      pl.BlockSpec((tm, C2), lambda i: (i, 0)),
                      pl.BlockSpec((C1, Cmid), lambda i: (0, 0)),
                      pl.BlockSpec((C2, Cmid), lambda i: (0, 0)),
                      pl.BlockSpec((Cmid, Cp), lambda i: (0, 0)),
                      pl.BlockSpec((1, Cp), lambda i: (0, 0))],
            out_specs=pl.BlockSpec((tm, Cp), lambda i: (i, 0))),
        compiler_params=pltpu.CompilerParams(
            dimension_semantics=("parallel",),
            vmem_limit_bytes=_VMEM_LIMIT),
    )(xd2, xe2, w7a_d, w7a_e, w7b, b7b)

    return seg[:, :num_classes].reshape(N, H, W, num_classes)


# ----------------------------------------------------------------------------
# Pooling / resize / fold helpers (plain JAX glue, kept in bf16)
# ----------------------------------------------------------------------------
def maxpool_3x3_s2_p1(x):
    N, H, W, C = x.shape
    xp = jnp.pad(x, ((0, 0), (1, 1), (1, 1), (0, 0)), constant_values=-jnp.inf)
    Ho = (H + 2 - 3) // 2 + 1
    Wo = (W + 2 - 3) // 2 + 1
    out = jnp.full((N, Ho, Wo, C), -jnp.inf, x.dtype)
    for ih in range(3):
        for iw in range(3):
            out = jnp.maximum(out, xp[:, ih:ih + 2 * (Ho - 1) + 1:2,
                                         iw:iw + 2 * (Wo - 1) + 1:2, :])
    return out


def bilinear_resize(x, oh, ow):
    """F.interpolate(..., mode='bilinear', align_corners=True)."""
    N, H, W, C = x.shape
    if H == oh and W == ow:
        return x

    def coords(out, inp):
        if out == 1:
            return jnp.zeros((1,), jnp.float32)
        return jnp.arange(out, dtype=jnp.float32) * ((inp - 1) / (out - 1))

    hs, ws = coords(oh, H), coords(ow, W)
    h0 = jnp.floor(hs).astype(jnp.int32)
    w0 = jnp.floor(ws).astype(jnp.int32)
    h1 = jnp.minimum(h0 + 1, H - 1)
    w1 = jnp.minimum(w0 + 1, W - 1)
    dh = (hs - h0.astype(jnp.float32)).reshape(1, oh, 1, 1).astype(x.dtype)
    dw = (ws - w0.astype(jnp.float32)).reshape(1, 1, ow, 1).astype(x.dtype)
    x_h0, x_h1 = x[:, h0], x[:, h1]
    tl, tr = x_h0[:, :, w0], x_h0[:, :, w1]
    bl, br = x_h1[:, :, w0], x_h1[:, :, w1]
    top = tl * (1 - dw) + tr * dw
    bot = bl * (1 - dw) + br * dw
    return top * (1 - dh) + bot * dh


def adaptive_avg_pool(x, out_size):
    N, H, W, C = x.shape
    rows = []
    for i in range(out_size):
        h0 = (i * H) // out_size
        h1 = -((-(i + 1) * H) // out_size)
        cols = []
        for j in range(out_size):
            w0 = (j * W) // out_size
            w1 = -((-(j + 1) * W) // out_size)
            cols.append(jnp.mean(x[:, h0:h1, w0:w1, :].astype(jnp.float32),
                                 axis=(1, 2)).astype(x.dtype))
        rows.append(jnp.stack(cols, axis=1))
    return jnp.stack(rows, axis=1)


def unfold_hv(x, step_r):
    # Edge_Module.unfold_horizon_vertical (square inputs), NHWC version.
    n, h, w, c = x.shape
    sw = w // step_r[0]
    sh = h // step_r[1]
    nh, nw = h // sw, w // sh
    xr = x.reshape(n, nh, sw, nw, sh, c).transpose(0, 1, 3, 2, 4, 5)
    return xr.reshape(n * nh * nw, sw, sh, c)


def fold_hv(x, step_r):
    bg, h, w, c = x.shape
    gnum = step_r[0] * step_r[1]
    b = bg // gnum
    xr = x.reshape(b, step_r[0], step_r[1], h, w, c).transpose(0, 1, 3, 2, 4, 5)
    return xr.reshape(b, h * step_r[0], w * step_r[1], c)


# ----------------------------------------------------------------------------
# Deterministic parameter construction (weights pre-packed for the kernel)
# ----------------------------------------------------------------------------
_KEY = jax.random.PRNGKey(0)
_CNT = [0]


def _kaiming(kh, kw, cin, cout):
    _CNT[0] += 1
    k = jax.random.fold_in(_KEY, _CNT[0])
    std = float(np.sqrt(2.0 / (kh * kw * cin)))
    return jax.random.normal(k, (kh, kw, cin, cout), jnp.float32) * std


def conv_p(kh, kw, cin, cout, bias=False):
    """Pre-reshape / pre-pad / pre-cast a conv weight to the (Kp,Np) bf16 slab
    the Pallas matmul kernel consumes (done once at build time)."""
    w = _kaiming(kh, kw, cin, cout)
    K = kh * kw * cin
    Kp, _ = _choose_k(K)
    Np, _ = _choose_n(cout)
    w2d = jnp.pad(w.reshape(K, cout), ((0, Kp - K), (0, Np - cout)))
    w2d = w2d.astype(jnp.bfloat16)
    b = jnp.zeros((1, Np), jnp.float32) if bias else None
    return {"w2d": w2d, "b": b, "kh": kh, "kw": kw, "cin": cin, "cout": cout}


# ----- Bottleneck residual block (CE2P bottleneck, expansion=4) --------------
def make_bottleneck(cin, planes, stride=1, dilation=1, downsample=False):
    p = {"conv1": conv_p(1, 1, cin, planes),
         "conv2": conv_p(3, 3, planes, planes),
         "conv3": conv_p(1, 1, planes, planes * 4),
         "stride": stride, "dilation": dilation}
    if downsample:
        p["down"] = conv_p(1, 1, cin, planes * 4)
    return p


def bottleneck_fwd(p, x):
    out = conv2d(x, p["conv1"], act="relu")
    out = conv2d(out, p["conv2"], act="relu", stride=p["stride"],
                 padding=p["dilation"], dilation=p["dilation"])
    res = conv2d(x, p["down"], act="none", stride=p["stride"]) if "down" in p else x
    # residual add + ReLU fused into the conv3 matmul epilogue
    return conv2d(out, p["conv3"], act="none", extra=res, epilogue="add_relu")


def make_layer(cin, planes, blocks, stride=1, dilation=1):
    layers = []
    down = (stride != 1 or cin != planes * 4)
    layers.append(make_bottleneck(cin, planes, stride, dilation, down))
    cin = planes * 4
    for _ in range(1, blocks):
        layers.append(make_bottleneck(cin, planes, 1, dilation, False))
    return layers, cin


def layer_fwd(layers, x):
    for p in layers:
        x = bottleneck_fwd(p, x)
    return x


# ----- GCN -------------------------------------------------------------------
# TODO(synk): GCN class is not defined in the provided source; using the standard
#             "Large Kernel Matters" GCN: (k x 1 -> 1 x k) + (1 x k -> k x 1).
def make_gcn(cin, cout, k):
    kh, kw = k
    return {"l1": conv_p(kh, 1, cin, cout, bias=True),
            "l2": conv_p(1, kw, cout, cout, bias=True),
            "r1": conv_p(1, kw, cin, cout, bias=True),
            "r2": conv_p(kh, 1, cout, cout, bias=True),
            "k": (kh, kw)}


def gcn_fwd(p, x):
    kh, kw = p["k"]
    xl = conv2d(x, p["l1"], padding=(kh // 2, 0))
    xl = conv2d(xl, p["l2"], padding=(0, kw // 2))
    xr = conv2d(x, p["r1"], padding=(0, kw // 2))
    xr = conv2d(xr, p["r2"], padding=(kh // 2, 0))
    return xl + xr


# ----- Foreground_Module ------------------------------------------------------
def make_foreground(num_classes):
    return {
        "res1": conv_p(3, 3, 256, 256),
        "res2": conv_p(3, 3, 512, 256),
        "res3_1": conv_p(3, 3, 1024, 512),
        "res3_2": conv_p(3, 3, 512, 256),
        "res4_1": conv_p(3, 3, 2048, 1024),
        "res4_2": conv_p(3, 3, 1024, 512),
        "res4_3": conv_p(3, 3, 512, 256),
        # cat_fg_conv (256 out) and cat_seg_conv (512 out) merged along N so the
        # K=9216 x_cat stream is read once.
        "cat_fgseg": conv_p(3, 3, 1024, 256 + 512),
        "down_fg": conv_p(1, 1, 256, 2, bias=True),
        "down_seg": conv_p(1, 1, 512, num_classes, bias=True),
    }


def foreground_fwd(p, x1, x2, x3, x4):
    x1 = conv2d(x1, p["res1"], act="relu", padding=1)
    h, w = x1.shape[1], x1.shape[2]
    x2 = conv2d(x2, p["res2"], act="relu", padding=1)
    x2 = bilinear_resize(x2, h, w)
    x3 = conv2d(x3, p["res3_1"], act="relu", padding=1)
    x3 = bilinear_resize(x3, 2 * x3.shape[1], 2 * x3.shape[2])
    x3 = conv2d(x3, p["res3_2"], act="relu", padding=1)
    x3 = bilinear_resize(x3, h, w)
    x4 = conv2d(x4, p["res4_1"], act="relu", padding=1)
    x4 = bilinear_resize(x4, 2 * x4.shape[1], 2 * x4.shape[2])
    x4 = conv2d(x4, p["res4_2"], act="relu", padding=1)
    x4 = bilinear_resize(x4, h, w)
    x4 = conv2d(x4, p["res4_3"], act="relu", padding=1)
    x_cat = jnp.concatenate([x1, x2, x3, x4], axis=-1)
    x_fgseg = conv2d(x_cat, p["cat_fgseg"], act="relu", padding=1)
    x_fg = x_fgseg[..., :256]
    x_seg = x_fgseg[..., 256:]
    # Dropout2d(0.1) is identity at inference.
    fg = conv2d(x_fg, p["down_fg"])
    seg = conv2d(x_seg, p["down_seg"])
    return (x_fg, x_seg), (fg, seg)


# ----- PSPModule --------------------------------------------------------------
def make_psp(features=2048, out_features=512, sizes=(1, 2, 3, 6)):
    return {"sizes": sizes,
            "stages": [conv_p(1, 1, features, out_features) for _ in sizes],
            "bottleneck": conv_p(3, 3, features + len(sizes) * out_features,
                                 out_features)}


def psp_fwd(p, feats):
    h, w = feats.shape[1], feats.shape[2]
    priors = []
    for size, wconv in zip(p["sizes"], p["stages"]):
        y = adaptive_avg_pool(feats, size)
        y = conv2d(y, wconv, act="lrelu")
        priors.append(bilinear_resize(y, h, w))
    priors.append(feats)
    return conv2d(jnp.concatenate(priors, axis=-1), p["bottleneck"],
                  act="lrelu", padding=1)


# ----- Edge_Module -------------------------------------------------------------
def make_edge(in_fea=(256, 512, 1024, 512), mid_fea=256, out_fea=2):
    return {"conv1": conv_p(1, 1, in_fea[0], mid_fea),
            "conv2": conv_p(1, 1, in_fea[1], mid_fea),
            "conv3": conv_p(1, 1, in_fea[2], mid_fea),
            "conv4": conv_p(1, 1, in_fea[3], mid_fea),
            "conv_edge": make_gcn(mid_fea, out_fea, (5, 5)),
            "conv_cat_edge": make_gcn(out_fea * 4, out_fea, (7, 7))}


def edge_fwd(p, x1, x2, x3, x_fg, step=(2, 2)):
    x1, x2 = unfold_hv(x1, step), unfold_hv(x2, step)
    x3, x_fg = unfold_hv(x3, step), unfold_hv(x_fg, step)
    e1f = conv2d(x1, p["conv1"], act="lrelu")
    e1 = gcn_fwd(p["conv_edge"], e1f)
    e2f = conv2d(x2, p["conv2"], act="lrelu")
    e2 = gcn_fwd(p["conv_edge"], e2f)
    e3f = conv2d(x3, p["conv3"], act="lrelu")
    e3 = gcn_fwd(p["conv_edge"], e3f)
    e4f = conv2d(x_fg, p["conv4"], act="lrelu")
    e4 = gcn_fwd(p["conv_edge"], e4f)
    h, w = x1.shape[1], x1.shape[2]
    e2f = bilinear_resize(e2f, h, w)
    e3f = bilinear_resize(e3f, h, w)
    e2 = bilinear_resize(e2, h, w)
    e3 = bilinear_resize(e3, h, w)
    edge = jnp.concatenate([e1, e2, e3, e4], axis=-1)
    edge_fea = jnp.concatenate([e1f, e2f, e3f, e4f], axis=-1)
    edge = gcn_fwd(p["conv_cat_edge"], edge)
    return fold_hv(edge, step), fold_hv(edge_fea, step)


# ----- Decoder_Module ----------------------------------------------------------
def make_decoder(num_classes):
    p = {"conv1": conv_p(1, 1, 512, 256),
         "conv2": conv_p(1, 1, 256, 48),
         "num_classes": num_classes}
    # conv3a / conv3b / conv4 weights pre-packed for the fused decoder kernel.
    w3a = _kaiming(1, 1, 304, 256).reshape(304, 256)
    p["w3a_t"] = w3a[:256].astype(jnp.bfloat16)                       # xt rows
    p["w3a_l"] = jnp.pad(w3a[256:], ((0, 128 - 48), (0, 0))).astype(jnp.bfloat16)
    p["w3b"] = _kaiming(1, 1, 256, 256).reshape(256, 256).astype(jnp.bfloat16)
    cp = _round_up(num_classes, 128)
    w4 = _kaiming(1, 1, 256, num_classes).reshape(256, num_classes)
    p["w4"] = jnp.pad(w4, ((0, 0), (0, cp - num_classes))).astype(jnp.bfloat16)
    p["b4"] = jnp.zeros((1, cp), jnp.float32)
    return p


def decoder_fwd(p, xt, xl, xfg):
    h, w = xl.shape[1], xl.shape[2]
    xt = bilinear_resize(conv2d(xt, p["conv1"], act="lrelu"), h, w)
    # conv2 output kept channel-padded to 128 (pad cols are exact zeros) so the
    # fused kernel needs no slice / concat.
    xl48 = conv2d(xl, p["conv2"], act="lrelu", out_padded=True)
    # conv3a -> conv3b -> x*sigmoid(xfg) -> conv4 fused in one Pallas call.
    seg, feat = _decoder_fused_impl(xt, xl48, xfg, p["w3a_t"], p["w3a_l"],
                                    p["w3b"], p["w4"], p["b4"],
                                    num_classes=p["num_classes"])
    return seg, feat


# ----- ResNet (top level) ------------------------------------------------------
def make_resnet(layers, num_classes):
    p = {}
    p["conv1"] = conv_p(3, 3, 3, 64)
    p["conv2"] = conv_p(3, 3, 64, 64)
    p["conv3"] = conv_p(3, 3, 64, 128)
    inplanes = 128
    p["layer1"], inplanes = make_layer(inplanes, 64, layers[0])
    p["layer2"], inplanes = make_layer(inplanes, 128, layers[1], stride=2)
    p["layer3"], inplanes = make_layer(inplanes, 256, layers[2], stride=2)
    p["layer4"], inplanes = make_layer(inplanes, 512, layers[3], stride=1, dilation=2)
    p["fg_layer"] = make_foreground(num_classes)
    p["layer5"] = make_psp(2048, 512)
    p["edge_layer"] = make_edge()
    p["layer6"] = make_decoder(num_classes)
    # layer7 (1x1 1280->256 lrelu, 1x1 256->C bias) pre-packed for fused kernel.
    w7a = _kaiming(1, 1, 1280, 256).reshape(1280, 256)
    p["w7a_d"] = w7a[:256].astype(jnp.bfloat16)      # x_decod rows
    p["w7a_e"] = w7a[256:].astype(jnp.bfloat16)      # edge_fea rows
    cp = _round_up(num_classes, 128)
    w7b = _kaiming(1, 1, 256, num_classes).reshape(256, num_classes)
    p["w7b"] = jnp.pad(w7b, ((0, 0), (0, cp - num_classes))).astype(jnp.bfloat16)
    p["b7b"] = jnp.zeros((1, cp), jnp.float32)
    p["num_classes"] = num_classes
    p["seg_rescore"] = make_gcn(num_classes * 3, num_classes, (31, 31))
    return p


def resnet_fwd(p, x):
    x = conv2d(x, p["conv1"], act="relu", stride=2, padding=1)
    x = conv2d(x, p["conv2"], act="relu", padding=1)
    x = conv2d(x, p["conv3"], act="relu", padding=1)
    x = maxpool_3x3_s2_p1(x)
    x2 = layer_fwd(p["layer1"], x)
    x3 = layer_fwd(p["layer2"], x2)
    x4 = layer_fwd(p["layer3"], x3)
    x5 = layer_fwd(p["layer4"], x4)
    (x_fg, x_seg), (fg_pred, seg_pred) = foreground_fwd(p["fg_layer"], x2, x3, x4, x5)
    x_psp = psp_fwd(p["layer5"], x5)
    edge, edge_fea = edge_fwd(p["edge_layer"], x2, x3, x4, x_seg, step=(2, 2))
    seg1, x_decod = decoder_fwd(p["layer6"], x_psp, x2, x_fg)
    # layer7 (conv + dropout(identity) + conv) fused; concat avoided by split W.
    seg2 = _layer7_fused_impl(x_decod, edge_fea, p["w7a_d"], p["w7a_e"],
                              p["w7b"], p["b7b"], num_classes=p["num_classes"])
    seg_rescore = gcn_fwd(p["seg_rescore"],
                          jnp.concatenate([seg1, seg2, seg_pred], axis=-1))
    outs = [[seg1, seg2, seg_pred, seg_rescore], edge, fg_pred]
    return jax.tree_util.tree_map(lambda t: t.astype(jnp.float32), outs)


if __name__ == "__main__":
    num_classes = 7
    params = make_resnet([1, 1, 1, 1], num_classes)

    key = jax.random.PRNGKey(0)
    x = jax.random.normal(key, (1, 64, 64, 3), jnp.float32)  # NHWC (== NCHW [1,3,64,64])

    outs = resnet_fwd(params, x)
    (seg1, seg2, seg_pred, seg_rescore), edge, fg_pred = outs[0], outs[1], outs[2]
    for t in (seg1, seg2, seg_pred, seg_rescore, edge, fg_pred):
        jax.block_until_ready(t)

    assert seg1.shape == (1, 16, 16, num_classes)
    assert seg2.shape == (1, 16, 16, num_classes)
    assert seg_pred.shape == (1, 16, 16, num_classes)
    assert seg_rescore.shape == (1, 16, 16, num_classes)
    assert edge.shape == (1, 16, 16, 2)
    assert fg_pred.shape == (1, 16, 16, 2)
    print("KERNEL_OK")
</pallas_src>

<mosaic_0001>
module attributes {stable_mosaic.version = 11 : i64} {
  func.func @kernel(%arg0: i32, %arg1: i32, %arg2: memref<256x128xbf16, #tpu.memory_space<vmem>>, %arg3: memref<128x128xbf16, #tpu.memory_space<vmem>>, %arg4: memref<256x128xbf16, #tpu.memory_space<vmem>>) attributes {dimension_semantics = [#tpu.dimension_semantics<parallel>, #tpu.dimension_semantics<parallel>], iteration_bounds = array<i64: 4, 1>, scalar_prefetch = 0 : i64, scratch_operands = 0 : i64, tpu.core_type = #tpu.core_type<tc>, window_params = [{transform_indices = @transform_0, window_bounds = array<i64: 256, 128>}, {transform_indices = @transform_1, window_bounds = array<i64: 128, 128>}, {transform_indices = @transform_2, window_bounds = array<i64: 256, 128>}]} {
    %c0 = arith.constant 0 : index
    %c0_0 = arith.constant 0 : index
    %0 = vector.load %arg2[%c0, %c0_0] : memref<256x128xbf16, #tpu.memory_space<vmem>>, vector<256x128xbf16>
    %c0_1 = arith.constant 0 : index
    %c0_2 = arith.constant 0 : index
    %1 = vector.load %arg3[%c0_1, %c0_2] : memref<128x128xbf16, #tpu.memory_space<vmem>>, vector<128x128xbf16>
    %cst = arith.constant dense<0.000000e+00> : vector<256x128xf32>
    %2 = tpu.matmul %0, %1, %cst {dimension_numbers = #tpu.dot_dimension_numbers<[1], [0], [0], [1], [0, 0, 1, 1], [], []>} : vector<256x128xbf16>, vector<128x128xbf16>, vector<256x128xf32> -> vector<256x128xf32>
    %cst_3 = arith.constant 0.000000e+00 : f32
    %3 = vector.broadcast %cst_3 : f32 to vector<256x128xf32>
    %4 = arith.maximumf %2, %3 : vector<256x128xf32>
    %5 = arith.truncf %4 : vector<256x128xf32> to vector<256x128xbf16>
    %c0_4 = arith.constant 0 : index
    %c0_5 = arith.constant 0 : index
    %6 = vector.load %arg4[%c0_4, %c0_5] : memref<256x128xbf16, #tpu.memory_space<vmem>>, vector<256x128xbf16>
    tpu.vector_store %arg4[%c0_4, %c0_5], %5 {strides = array<i32>} : memref<256x128xbf16, #tpu.memory_space<vmem>>, vector<256x128xbf16>,
    return
  }
  func.func @transform_0(%arg0: i32, %arg1: i32) -> (i32, i32) {
    %c0_i32 = arith.constant 0 : i32
    %c0_i32_0 = arith.constant 0 : i32
    return %arg0, %c0_i32 : i32, i32
  }
  func.func @transform_1(%arg0: i32, %arg1: i32) -> (i32, i32) {
    %c0_i32 = arith.constant 0 : i32
    %c0_i32_0 = arith.constant 0 : i32
    return %c0_i32, %arg1 : i32, i32
  }
  func.func @transform_2(%arg0: i32, %arg1: i32) -> (i32, i32) {
    %c0_i32 = arith.constant 0 : i32
    return %arg0, %arg1 : i32, i32
  }
}

</mosaic_0001>

<llo_original>
// kernel: _conv2d_impl.1
$region0: #{_conv2d_impl.1}
  #allocation0 [shape = 'u32[]', space=smem, size = 0x4, offset = 0x4, fixed_abs, tag = 'smem constant byte address 0x4 - core index']
  #allocation1 [shape = 'u32[144,128]{1,0:T(1,128)}', space=vmem, size = 0x12000, scoped, tag = 'internal scratch']
  %s0 = inlined_call_operand.vmem [shape: bf16[1024,128], index: 0, kind: input, shape index: {}]
  %s1 = inlined_call_operand.vmem [shape: bf16[128,128], index: 1, kind: input, shape index: {}]
  %s2 = inlined_call_operand.hbm [shape: bf16[1024,128], index: 2, kind: output, shape index: {}]
  %s3 = sld [smem:[#allocation0]]
  $region41: #{_conv2d_impl.1} parent=0
    _
  %s5 = ssub.s32 1, %s3
  %s6 = scalar_select 0, %s5, %s3
  $region1: #{_conv2d_impl.1} parent=0
    #allocation2 [shape = 'u8[131072]{0}', space=vmem, size = 0x20000, scoped, tag = 'output window, operand 0']
    #allocation3 [shape = 's32[2]{0}', space=sflag, size = 0x8, scoped, tag = 'scoped memory for _conv2d_impl.1']
    %7 = vsyncpa [#allocation3], 0
    %s8 = scalar_lea.sflag [#allocation3], 1
    %9 = vsyncpa %s8, 0
    loop: start=0, step=1, limit=6
    $region2: #{_conv2d_impl.1} parent=1 // loop_pre_header
      _
    $region3: #{_conv2d_impl.1} parent=1 // loop_header
      %s11 = sphi 0, %s15
      %p12 = scmp.ge.s32.totalorder %s11, 6
      %s18 = sphi 0, %s30
      %s19 = sphi 0, %s26
      %s20 = sphi 0, %s18
      %s21 = sphi 0, %s19
      %s22 = sphi 0, %s20
      %s23 = sphi 0, %s21
      %s33 = sphi 0, %s35
      %s36 = sphi 0, %s33
      %s37 = sphi 0, %s36
      %s53 = sphi 0, %s37
      %s59 = sphi 0, %s61
      %s62 = sphi 0, %s59
      %s63 = sphi 0, %s62
      %s79 = sphi 0, %s63
      %s87 = sphi 0, %s89
      %s90 = sphi 0, %s87
      %s91 = sphi 0, %s90
      %s107 = sphi 0, %s91
    $region4: #{_conv2d_impl.1} parent=1 // loop_header_branch
      %14 = sbr.rel (%p12) target = $region8
    $region5: #{_conv2d_impl.1} parent=1 // loop_body
      %s16 = ssub.s32 %s11, 1
      %s17 = ssub.s32 %s11, 2
      %s24 = sadd.s32 1, %s19
      %p25 = scmp.ge.s32.totalorder %s24, 1
      %s26 = scalar_select %p25, 0, %s24
      %s27 = sadd.s32 1, %s18
      %s28 = scalar_select %p25, %s27, %s18
      %p29 = scmp.ge.s32.totalorder %s28, 4
      %s30 = scalar_select %p29, 0, %s28
      %s31 = ssub.s32 %s18, %s30
      %p32 = scmp.eq.s32.totalorder %s31, 0
      %s34 = sadd.s32 %s33, 1
      %s35 = scalar_select %p32, %s33, %s34
      %p38 = pneg %p32
      %p39 = scmp.eq.s32.totalorder %s11, 3
      %p40 = por %p38, %p39
      %p41 = scmp.ne.s32.totalorder %s33, %s36
      %p42 = scmp.eq.s32.totalorder %s11, 0
      %p43 = por %p41, %p42
      %p44 = scmp.ne.s32.totalorder %s33, %s36
      %p45 = scmp.eq.s32.totalorder %s16, 3
      %p46 = por %p44, %p45
      %p47 = scmp.ne.s32.totalorder %s36, %s37
      %p48 = scmp.eq.s32.totalorder %s16, 0
      %p49 = por %p47, %p48
      %p50 = scmp.ne.s32.totalorder %s36, %s37
      %p51 = scmp.eq.s32.totalorder %s17, 3
      %p52 = por %p50, %p51
      %p54 = scmp.ne.s32.totalorder %s37, %s53
      %p55 = scmp.eq.s32.totalorder %s17, 0
      %p56 = por %p54, %p55
      %s57 = ssub.s32 %s19, %s26
      %p58 = scmp.eq.s32.totalorder %s57, 0
      %s60 = sadd.s32 %s59, 1
      %s61 = scalar_select %p58, %s59, %s60
      %p64 = pneg %p58
      %p65 = scmp.eq.s32.totalorder %s11, 3
      %p66 = por %p64, %p65
      %p67 = scmp.ne.s32.totalorder %s59, %s62
      %p68 = scmp.eq.s32.totalorder %s11, 0
      %p69 = por %p67, %p68
      %p70 = scmp.ne.s32.totalorder %s59, %s62
      %p71 = scmp.eq.s32.totalorder %s16, 3
      %p72 = por %p70, %p71
      %p73 = scmp.ne.s32.totalorder %s62, %s63
      %p74 = scmp.eq.s32.totalorder %s16, 0
      %p75 = por %p73, %p74
      %p76 = scmp.ne.s32.totalorder %s62, %s63
      %p77 = scmp.eq.s32.totalorder %s17, 3
      %p78 = por %p76, %p77
      %p80 = scmp.ne.s32.totalorder %s63, %s79
      %p81 = scmp.eq.s32.totalorder %s17, 0
      %p82 = por %p80, %p81
      %s83 = ssub.s32 %s18, %s30
      %s84 = ssub.s32 %s19, %s26
      %s85 = sor.u32 %s83, %s84
      %p86 = scmp.eq.s32.totalorder %s85, 0
      %s88 = sadd.s32 %s87, 1
      %s89 = scalar_select %p86, %s87, %s88
      %p92 = pneg %p86
      %p93 = scmp.eq.s32.totalorder %s11, 3
      %p94 = por %p92, %p93
      %p95 = scmp.ne.s32.totalorder %s87, %s90
      %p96 = scmp.eq.s32.totalorder %s11, 0
      %p97 = por %p95, %p96
      %p98 = scmp.ne.s32.totalorder %s87, %s90
      %p99 = scmp.eq.s32.totalorder %s16, 3
      %p100 = por %p98, %p99
      %p101 = scmp.ne.s32.totalorder %s90, %s91
      %p102 = scmp.eq.s32.totalorder %s16, 0
      %p103 = por %p101, %p102
      %p104 = scmp.ne.s32.totalorder %s90, %s91
      %p105 = scmp.eq.s32.totalorder %s17, 3
      %p106 = por %p104, %p105
      %p108 = scmp.ne.s32.totalorder %s91, %s107
      %p109 = scmp.eq.s32.totalorder %s17, 0
      %p110 = por %p108, %p109
      %p111 = scmp.le.s32.totalorder 1, %s11
      %p112 = scmp.lt.s32.totalorder %s11, 5
      %p113 = pnand %p111, %p112
      %p114 = pneg %p113
      // Predicated region
      $region9: #{_conv2d_impl.1} parent=5 // pred_check
        _
      $region10: #{_conv2d_impl.1} parent=5 // pred_check_branch
        %116 = sbr.rel (%p113) target = $region12
      $region11: #{_conv2d_impl.1} parent=5 // pred_region
        %s117 = ssub.s32 %s11, 1
        // Predicated region
        $region13: #{_conv2d_impl.1} parent=11 // pred_check
          %p118 = pneg %p75
        $region14: #{_conv2d_impl.1} parent=11 // pred_check_branch
          %120 = sbr.rel (%p118) target = $region16
        $region15: #{_conv2d_impl.1} parent=11 // pred_region
          %p121 = scmp.lt.s32.totalorder %s21, 0
          %s122 = scalar_select %p121, %s21, 0
          %s123 = smul.addr %s122, 4
          %s124 = scalar_lea.vmem %s1, %s123
        $region16: #{_conv2d_impl.1} parent=11 // pred_fallthru
          _
      $region12: #{_conv2d_impl.1} parent=5 // pred_fallthru
        _
      %p125 = scmp.lt.s32.totalorder %s11, 4
      // Predicated region
      $region17: #{_conv2d_impl.1} parent=5 // pred_check
        %p126 = pneg %p125
      $region18: #{_conv2d_impl.1} parent=5 // pred_check_branch
        %128 = sbr.rel (%p126) target = $region20
      $region19: #{_conv2d_impl.1} parent=5 // pred_region
        // Predicated region
        $region21: #{_conv2d_impl.1} parent=19 // pred_check
          %p129 = pneg %p43
        $region22: #{_conv2d_impl.1} parent=19 // pred_check_branch
          %131 = sbr.rel (%p129) target = $region24
        $region23: #{_conv2d_impl.1} parent=19 // pred_region
          %s132 = smul.u32 32, %s18
          %p133 = scmp.lt.s32.totalorder %s132, 127
          %s134 = scalar_select %p133, %s132, 127
          %s135 = smul.addr %s134, 4
          %s136 = scalar_lea.vmem %s0, %s135
          %s137 = smul.u32 32, %s18
        $region24: #{_conv2d_impl.1} parent=19 // pred_fallthru
          _
      $region20: #{_conv2d_impl.1} parent=5 // pred_fallthru
        _
      %p138 = scmp.le.s32.totalorder 1, %s11
      %p139 = scmp.lt.s32.totalorder %s11, 5
      %p140 = pnand %p138, %p139
      %p141 = pneg %p140
      // Predicated region
      $region25: #{_conv2d_impl.1} parent=5 // pred_check
        _
      $region26: #{_conv2d_impl.1} parent=5 // pred_check_branch
        %143 = sbr.rel (%p140) target = $region28
      $region27: #{_conv2d_impl.1} parent=5 // pred_region
        %s144 = ssub.s32 %s11, 1
        %s145 = smul.u32 32, %s20
        %p146 = scmp.lt.s32.totalorder %s145, 127
        %s147 = scalar_select %p146, %s145, 127
        %s148 = smul.addr %s147, 4
        %s149 = scalar_lea.vmem %s0, %s148
        %p150 = pneg %p49
        %p151 = pneg %p46
        %p152 = scmp.lt.s32.totalorder %s21, 0
        %s153 = scalar_select %p152, %s21, 0
        %s154 = smul.addr %s153, 4
        %s155 = scalar_lea.vmem %s1, %s154
        %p156 = pneg %p75
        %p157 = pneg %p72
        %p158 = pneg %p103
        %p159 = pneg %p100
        %s160 = sand.u32 %s90, 1
        %s161 = scalar_lea.sflag [#allocation3], %s160
        %s162 = sand.u32 %s90, 1
        %s163 = smul.addr %s162, 128
        %s164 = scalar_lea.vmem [#allocation2], %s163
        %s165 = smul.u32 32, %s20
        %p166 = scmp.lt.s32.totalorder %s165, 127
        %s167 = scalar_select %p166, %s165, 127
        %s168 = smul.addr %s167, 4
        %s169 = scalar_lea.vmem %s0, %s168
        %s170 = smul.u32 32, %s20
        %p171 = scmp.lt.s32.totalorder %s21, 0
        %s172 = scalar_select %p171, %s21, 0
        %s173 = smul.addr %s172, 4
        %s174 = scalar_lea.vmem %s1, %s173
        %s175 = smul.u32 32, %s20
        %v177 = vld [vmem:[%s169] sm:$0xf]
        %v178 = vld [vmem:[%s169 + $0x4] sm:$0xf]
        %v179 = vld [vmem:[%s169 + $0x8] sm:$0xf]
        %v180 = vld [vmem:[%s169 + $0xc] sm:$0xf]
        %v181 = vld [vmem:[%s169 + $0x10] sm:$0xf]
        %v182 = vld [vmem:[%s169 + $0x14] sm:$0xf]
        %v183 = vld [vmem:[%s169 + $0x18] sm:$0xf]
        %v184 = vld [vmem:[%s169 + $0x1c] sm:$0xf]
        %v185 = vld [vmem:[%s169 + $0x20] sm:$0xf]
        %v186 = vld [vmem:[%s169 + $0x24] sm:$0xf]
        %v187 = vld [vmem:[%s169 + $0x28] sm:$0xf]
        %v188 = vld [vmem:[%s169 + $0x2c] sm:$0xf]
        %v189 = vld [vmem:[%s169 + $0x30] sm:$0xf]
        %v190 = vld [vmem:[%s169 + $0x34] sm:$0xf]
        %v191 = vld [vmem:[%s169 + $0x38] sm:$0xf]
        %v192 = vld [vmem:[%s169 + $0x3c] sm:$0xf]
        %v193 = vld [vmem:[%s169 + $0x40] sm:$0xf]
        %v194 = vld [vmem:[%s169 + $0x44] sm:$0xf]
        %v195 = vld [vmem:[%s169 + $0x48] sm:$0xf]
        %v196 = vld [vmem:[%s169 + $0x4c] sm:$0xf]
        %v197 = vld [vmem:[%s169 + $0x50] sm:$0xf]
        %v198 = vld [vmem:[%s169 + $0x54] sm:$0xf]
        %v199 = vld [vmem:[%s169 + $0x58] sm:$0xf]
        %v200 = vld [vmem:[%s169 + $0x5c] sm:$0xf]
        %v201 = vld [vmem:[%s169 + $0x60] sm:$0xf]
        %v202 = vld [vmem:[%s169 + $0x64] sm:$0xf]
        %v203 = vld [vmem:[%s169 + $0x68] sm:$0xf]
        %v204 = vld [vmem:[%s169 + $0x6c] sm:$0xf]
        %v205 = vld [vmem:[%s169 + $0x70] sm:$0xf]
        %v206 = vld [vmem:[%s169 + $0x74] sm:$0xf]
        %v207 = vld [vmem:[%s169 + $0x78] sm:$0xf]
        %v208 = vld [vmem:[%s169 + $0x7c] sm:$0xf]
        %v209 = vld [vmem:[%s174] sm:$0xf]
        %v210 = vld [vmem:[%s174 + $0x4] sm:$0xf]
        %v211 = vld [vmem:[%s174 + $0x8] sm:$0xf]
        %v212 = vld [vmem:[%s174 + $0xc] sm:$0xf]
        %v213 = vld [vmem:[%s174 + $0x10] sm:$0xf]
        %v214 = vld [vmem:[%s174 + $0x14] sm:$0xf]
        %v215 = vld [vmem:[%s174 + $0x18] sm:$0xf]
        %v216 = vld [vmem:[%s174 + $0x1c] sm:$0xf]
        %v217 = vld [vmem:[%s174 + $0x20] sm:$0xf]
        %v218 = vld [vmem:[%s174 + $0x24] sm:$0xf]
        %v219 = vld [vmem:[%s174 + $0x28] sm:$0xf]
        %v220 = vld [vmem:[%s174 + $0x2c] sm:$0xf]
        %v221 = vld [vmem:[%s174 + $0x30] sm:$0xf]
        %v222 = vld [vmem:[%s174 + $0x34] sm:$0xf]
        %v223 = vld [vmem:[%s174 + $0x38] sm:$0xf]
        %v224 = vld [vmem:[%s174 + $0x3c] sm:$0xf]
        %v257 = vunpack.c.l.b16 %v177
        %v258 = vunpack.c.l.b16 %v178
        %v259 = vunpack.c.l.b16 %v179
        %v260 = vunpack.c.l.b16 %v180
        %v261 = vunpack.c.l.b16 %v181
        %v262 = vunpack.c.l.b16 %v182
        %v263 = vunpack.c.l.b16 %v183
        %v264 = vunpack.c.l.b16 %v184
        %v265 = vunpack.c.l.b16 %v185
        %v266 = vunpack.c.l.b16 %v186
        %v267 = vunpack.c.l.b16 %v187
        %v268 = vunpack.c.l.b16 %v188
        %v269 = vunpack.c.l.b16 %v189
        %v270 = vunpack.c.l.b16 %v190
        %v271 = vunpack.c.l.b16 %v191
        %v272 = vunpack.c.l.b16 %v192
        %v273 = vunpack.c.l.b16 %v193
        %v274 = vunpack.c.l.b16 %v194
        %v275 = vunpack.c.l.b16 %v195
        %v276 = vunpack.c.l.b16 %v196
        %v277 = vunpack.c.l.b16 %v197
        %v278 = vunpack.c.l.b16 %v198
        %v279 = vunpack.c.l.b16 %v199
        %v280 = vunpack.c.l.b16 %v200
        %v281 = vunpack.c.l.b16 %v201
        %v282 = vunpack.c.l.b16 %v202
        %v283 = vunpack.c.l.b16 %v203
        %v284 = vunpack.c.l.b16 %v204
        %v285 = vunpack.c.l.b16 %v205
        %v286 = vunpack.c.l.b16 %v206
        %v287 = vunpack.c.l.b16 %v207
        %v288 = vunpack.c.l.b16 %v208
        %v289 = vpack.c.b16 %v258, %v257
        %v290 = vpack.c.b16 %v260, %v259
        %v291 = vpack.c.b16 %v262, %v261
        %v292 = vpack.c.b16 %v264, %v263
        %v293 = vpack.c.b16 %v266, %v265
        %v294 = vpack.c.b16 %v268, %v267
        %v295 = vpack.c.b16 %v270, %v269
        %v296 = vpack.c.b16 %v272, %v271
        %v297 = vpack.c.b16 %v274, %v273
        %v298 = vpack.c.b16 %v276, %v275
        %v299 = vpack.c.b16 %v278, %v277
        %v300 = vpack.c.b16 %v280, %v279
        %v301 = vpack.c.b16 %v282, %v281
        %v302 = vpack.c.b16 %v284, %v283
        %v303 = vpack.c.b16 %v286, %v285
        %v304 = vpack.c.b16 %v288, %v287
        %v337 = vunpack.c.l.b16 %v209
        %v338 = vunpack.c.l.b16 %v210
        %v339 = vunpack.c.l.b16 %v211
        %v340 = vunpack.c.l.b16 %v212
        %v341 = vunpack.c.l.b16 %v213
        %v342 = vunpack.c.l.b16 %v214
        %v343 = vunpack.c.l.b16 %v215
        %v344 = vunpack.c.l.b16 %v216
        %v345 = vunpack.c.l.b16 %v217
        %v346 = vunpack.c.l.b16 %v218
        %v347 = vunpack.c.l.b16 %v219
        %v348 = vunpack.c.l.b16 %v220
        %v349 = vunpack.c.l.b16 %v221
        %v350 = vunpack.c.l.b16 %v222
        %v351 = vunpack.c.l.b16 %v223
        %v352 = vunpack.c.l.b16 %v224
        %v353 = vpack.c.b16 %v338, %v337
        %v354 = vpack.c.b16 %v340, %v339
        %v355 = vpack.c.b16 %v342, %v341
        %v356 = vpack.c.b16 %v344, %v343
        %v357 = vpack.c.b16 %v346, %v345
        %v358 = vpack.c.b16 %v348, %v347
        %v359 = vpack.c.b16 %v350, %v349
        %v360 = vpack.c.b16 %v352, %v351
        %369 = vmatprep.subr.bf16.mxu0 0
        %370 = vmatpush1.bf16.msra.mxu0 %v360
        %371 = vmatprep.subr.bf16.mxu0 0
        %372 = vmatpush1.bf16.msra.mxu0 %v359
        %373 = vmatprep.subr.bf16.mxu0 0
        %374 = vmatpush1.bf16.msra.mxu0 %v358
        %375 = vmatprep.subr.bf16.mxu0 0
        %376 = vmatpush1.bf16.msra.mxu0 %v357
        %377 = vmatprep.subr.bf16.mxu0 0
        %378 = vmatpush1.bf16.msra.mxu0 %v356
        %379 = vmatprep.subr.bf16.mxu0 0
        %380 = vmatpush1.bf16.msra.mxu0 %v355
        %381 = vmatprep.subr.bf16.mxu0 0
        %382 = vmatpush1.bf16.msra.mxu0 %v354
        %383 = vmatprep.subr.bf16.mxu0 0
        %384 = vmatpush1.bf16.msra.mxu0 %v353
        %385 = vmatprep.subr.bf16.mxu0 0
        %386 = vmatpush2.bf16.msra.mxu0 0
        %387 = vmatprep.subr.bf16.mxu0 0
        %388 = vmatpush2.bf16.msra.mxu0 0
        %389 = vmatprep.subr.bf16.mxu0 0
        %390 = vmatpush2.bf16.msra.mxu0 0
        %391 = vmatprep.subr.bf16.mxu0 0
        %392 = vmatpush2.bf16.msra.mxu0 0
        %393 = vmatprep.subr.bf16.mxu0 0
        %394 = vmatpush2.bf16.msra.mxu0 0
        %395 = vmatprep.subr.bf16.mxu0 0
        %396 = vmatpush2.bf16.msra.mxu0 0
        %397 = vmatprep.subr.bf16.mxu0 0
        %398 = vmatpush2.bf16.msra.mxu0 0
        %399 = vmatprep.subr.bf16.mxu0 0
        %400 = vmatpush2.bf16.msra.mxu0 0
        %401 = vmatprep.mubr.bf16.mxu0 0
        %402 = vmatmul.mubr.bf16.gmra.mxu0 %v289
        %v403 = vpop.f32.mrf.mxu0
        %v404 = vadd.f32 0.0, %v403
        %v405 = vpop.f32.mrf.mxu0
        %v406 = vpop.f32.mrf.mxu0
        %v407 = vadd.f32 0.0, %v406
        %v408 = vpop.f32.mrf.mxu0
        %409 = vmatprep.mubr.bf16.mxu0 0
        %410 = vmatmul.mubr.bf16.gmra.mxu0 %v290
        %v411 = vpop.f32.mrf.mxu0
        %v412 = vadd.f32 0.0, %v411
        %v413 = vpop.f32.mrf.mxu0
        %v414 = vpop.f32.mrf.mxu0
        %v415 = vadd.f32 0.0, %v414
        %v416 = vpop.f32.mrf.mxu0
        %417 = vmatprep.mubr.bf16.mxu0 0
        %418 = vmatmul.mubr.bf16.gmra.mxu0 %v291
        %v419 = vpop.f32.mrf.mxu0
        %v420 = vadd.f32 0.0, %v419
        %v421 = vpop.f32.mrf.mxu0
        %v422 = vpop.f32.mrf.mxu0
        %v423 = vadd.f32 0.0, %v422
        %v424 = vpop.f32.mrf.mxu0
        %425 = vmatprep.mubr.bf16.mxu0 0
        %426 = vmatmul.mubr.bf16.gmra.mxu0 %v292
        %v427 = vpop.f32.mrf.mxu0
        %v428 = vadd.f32 0.0, %v427
        %v429 = vpop.f32.mrf.mxu0
        %v430 = vpop.f32.mrf.mxu0
        %v431 = vadd.f32 0.0, %v430
        %v432 = vpop.f32.mrf.mxu0
        %433 = vmatprep.mubr.bf16.mxu0 0
        %434 = vmatmul.mubr.bf16.gmra.mxu0 %v293
        %v435 = vpop.f32.mrf.mxu0
        %v436 = vadd.f32 0.0, %v435
        %v437 = vpop.f32.mrf.mxu0
        %v438 = vpop.f32.mrf.mxu0
        %v439 = vadd.f32 0.0, %v438
        %v440 = vpop.f32.mrf.mxu0
        %441 = vmatprep.mubr.bf16.mxu0 0
        %442 = vmatmul.mubr.bf16.gmra.mxu0 %v294
        %v443 = vpop.f32.mrf.mxu0
        %v444 = vadd.f32 0.0, %v443
        %v445 = vpop.f32.mrf.mxu0
        %v446 = vpop.f32.mrf.mxu0
        %v447 = vadd.f32 0.0, %v446
        %v448 = vpop.f32.mrf.mxu0
        %449 = vmatprep.mubr.bf16.mxu0 0
        %450 = vmatmul.mubr.bf16.gmra.mxu0 %v295
        %v451 = vpop.f32.mrf.mxu0
        %v452 = vadd.f32 0.0, %v451
        %v453 = vpop.f32.mrf.mxu0
        %v454 = vpop.f32.mrf.mxu0
        %v455 = vadd.f32 0.0, %v454
        %v456 = vpop.f32.mrf.mxu0
        %457 = vmatprep.mubr.bf16.mxu0 0
        %458 = vmatmul.mubr.bf16.gmra.mxu0 %v296
        %v459 = vpop.f32.mrf.mxu0
        %v460 = vadd.f32 0.0, %v459
        %v461 = vpop.f32.mrf.mxu0
        %v462 = vpop.f32.mrf.mxu0
        %v463 = vadd.f32 0.0, %v462
        %v464 = vpop.f32.mrf.mxu0
        %465 = vmatprep.mubr.bf16.mxu0 0
        %466 = vmatmul.mubr.bf16.gmra.mxu0 %v297
        %v467 = vpop.f32.mrf.mxu0
        %v468 = vadd.f32 0.0, %v467
        %v469 = vpop.f32.mrf.mxu0
        %v470 = vpop.f32.mrf.mxu0
        %v471 = vadd.f32 0.0, %v470
        %v472 = vpop.f32.mrf.mxu0
        %473 = vmatprep.mubr.bf16.mxu0 0
        %474 = vmatmul.mubr.bf16.gmra.mxu0 %v298
        %v475 = vpop.f32.mrf.mxu0
        %v476 = vadd.f32 0.0, %v475
        %v477 = vpop.f32.mrf.mxu0
        %v478 = vpop.f32.mrf.mxu0
        %v479 = vadd.f32 0.0, %v478
        %v480 = vpop.f32.mrf.mxu0
        %481 = vmatprep.mubr.bf16.mxu0 0
        %482 = vmatmul.mubr.bf16.gmra.mxu0 %v299
        %v483 = vpop.f32.mrf.mxu0
        %v484 = vadd.f32 0.0, %v483
        %v485 = vpop.f32.mrf.mxu0
        %v486 = vpop.f32.mrf.mxu0
        %v487 = vadd.f32 0.0, %v486
        %v488 = vpop.f32.mrf.mxu0
        %489 = vmatprep.mubr.bf16.mxu0 0
        %490 = vmatmul.mubr.bf16.gmra.mxu0 %v300
        %v491 = vpop.f32.mrf.mxu0
        %v492 = vadd.f32 0.0, %v491
        %v493 = vpop.f32.mrf.mxu0
        %v494 = vpop.f32.mrf.mxu0
        %v495 = vadd.f32 0.0, %v494
        %v496 = vpop.f32.mrf.mxu0
        %497 = vmatprep.mubr.bf16.mxu0 0
        %498 = vmatmul.mubr.bf16.gmra.mxu0 %v301
        %v499 = vpop.f32.mrf.mxu0
        %v500 = vadd.f32 0.0, %v499
        %v501 = vpop.f32.mrf.mxu0
        %v502 = vpop.f32.mrf.mxu0
        %v503 = vadd.f32 0.0, %v502
        %v504 = vpop.f32.mrf.mxu0
        %505 = vmatprep.mubr.bf16.mxu0 0
        %506 = vmatmul.mubr.bf16.gmra.mxu0 %v302
        %v507 = vpop.f32.mrf.mxu0
        %v508 = vadd.f32 0.0, %v507
        %v509 = vpop.f32.mrf.mxu0
        %v510 = vpop.f32.mrf.mxu0
        %v511 = vadd.f32 0.0, %v510
        %v512 = vpop.f32.mrf.mxu0
        %513 = vmatprep.mubr.bf16.mxu0 0
        %514 = vmatmul.mubr.bf16.gmra.mxu0 %v303
        %v515 = vpop.f32.mrf.mxu0
        %v516 = vadd.f32 0.0, %v515
        %v517 = vpop.f32.mrf.mxu0
        %v518 = vpop.f32.mrf.mxu0
        %v519 = vadd.f32 0.0, %v518
        %v520 = vpop.f32.mrf.mxu0
        %521 = vmatprep.mubr.bf16.mxu0 0
        %522 = vmatmul.mubr.bf16.gmra.mxu0 %v304
        %v523 = vpop.f32.mrf.mxu0
        %v524 = vadd.f32 0.0, %v523
        %v525 = vpop.f32.mrf.mxu0
        %v526 = vpop.f32.mrf.mxu0
        %v527 = vadd.f32 0.0, %v526
        %v528 = vpop.f32.mrf.mxu0
        %529 = vdwg.mxu0
        %v530 = vmax.f32 %v404, 0.0
        %v531 = vmax.f32 %v407, 0.0
        %v532 = vmax.f32 %v412, 0.0
        %v533 = vmax.f32 %v415, 0.0
        %v534 = vmax.f32 %v420, 0.0
        %v535 = vmax.f32 %v423, 0.0
        %v536 = vmax.f32 %v428, 0.0
        %v537 = vmax.f32 %v431, 0.0
        %v538 = vmax.f32 %v436, 0.0
        %v539 = vmax.f32 %v439, 0.0
        %v540 = vmax.f32 %v444, 0.0
        %v541 = vmax.f32 %v447, 0.0
        %v542 = vmax.f32 %v452, 0.0
        %v543 = vmax.f32 %v455, 0.0
        %v544 = vmax.f32 %v460, 0.0
        %v545 = vmax.f32 %v463, 0.0
        %v546 = vmax.f32 %v468, 0.0
        %v547 = vmax.f32 %v471, 0.0
        %v548 = vmax.f32 %v476, 0.0
        %v549 = vmax.f32 %v479, 0.0
        %v550 = vmax.f32 %v484, 0.0
        %v551 = vmax.f32 %v487, 0.0
        %v552 = vmax.f32 %v492, 0.0
        %v553 = vmax.f32 %v495, 0.0
        %v554 = vmax.f32 %v500, 0.0
        %v555 = vmax.f32 %v503, 0.0
        %v556 = vmax.f32 %v508, 0.0
        %v557 = vmax.f32 %v511, 0.0
        %v558 = vmax.f32 %v516, 0.0
        %v559 = vmax.f32 %v519, 0.0
        %v560 = vmax.f32 %v524, 0.0
        %v561 = vmax.f32 %v527, 0.0
        %v562 = vpack.c.bf16 %v531, %v530
        %v563 = vpack.c.bf16 %v533, %v532
        %v564 = vpack.c.bf16 %v535, %v534
        %v565 = vpack.c.bf16 %v537, %v536
        %v566 = vpack.c.bf16 %v539, %v538
        %v567 = vpack.c.bf16 %v541, %v540
        %v568 = vpack.c.bf16 %v543, %v542
        %v569 = vpack.c.bf16 %v545, %v544
        %v570 = vpack.c.bf16 %v547, %v546
        %v571 = vpack.c.bf16 %v549, %v548
        %v572 = vpack.c.bf16 %v551, %v550
        %v573 = vpack.c.bf16 %v553, %v552
        %v574 = vpack.c.bf16 %v555, %v554
        %v575 = vpack.c.bf16 %v557, %v556
        %v576 = vpack.c.bf16 %v559, %v558
        %v577 = vpack.c.bf16 %v561, %v560
        %v594 = vunpack.c.l.b16 %v562
        %v595 = vunpack.c.h.b16 %v562
        %v596 = vunpack.c.l.b16 %v563
        %v597 = vunpack.c.h.b16 %v563
        %v598 = vunpack.c.l.b16 %v564
        %v599 = vunpack.c.h.b16 %v564
        %v600 = vunpack.c.l.b16 %v565
        %v601 = vunpack.c.h.b16 %v565
        %v602 = vunpack.c.l.b16 %v566
        %v603 = vunpack.c.h.b16 %v566
        %v604 = vunpack.c.l.b16 %v567
        %v605 = vunpack.c.h.b16 %v567
        %v606 = vunpack.c.l.b16 %v568
        %v607 = vunpack.c.h.b16 %v568
        %v608 = vunpack.c.l.b16 %v569
        %v609 = vunpack.c.h.b16 %v569
        %v610 = vunpack.c.l.b16 %v570
        %v611 = vunpack.c.h.b16 %v570
        %v612 = vunpack.c.l.b16 %v571
        %v613 = vunpack.c.h.b16 %v571
        %v614 = vunpack.c.l.b16 %v572
        %v615 = vunpack.c.h.b16 %v572
        %v616 = vunpack.c.l.b16 %v573
        %v617 = vunpack.c.h.b16 %v573
        %v618 = vunpack.c.l.b16 %v574
        %v619 = vunpack.c.h.b16 %v574
        %v620 = vunpack.c.l.b16 %v575
        %v621 = vunpack.c.h.b16 %v575
        %v622 = vunpack.c.l.b16 %v576
        %v623 = vunpack.c.h.b16 %v576
        %v624 = vunpack.c.l.b16 %v577
        %v625 = vunpack.c.h.b16 %v577
        %v626 = vpack.c.b16 %v594, %v594
        %v627 = vpack.c.b16 %v595, %v595
        %v628 = vpack.c.b16 %v596, %v596
        %v629 = vpack.c.b16 %v597, %v597
        %v630 = vpack.c.b16 %v598, %v598
        %v631 = vpack.c.b16 %v599, %v599
        %v632 = vpack.c.b16 %v600, %v600
        %v633 = vpack.c.b16 %v601, %v601
        %v634 = vpack.c.b16 %v602, %v602
        %v635 = vpack.c.b16 %v603, %v603
        %v636 = vpack.c.b16 %v604, %v604
        %v637 = vpack.c.b16 %v605, %v605
        %v638 = vpack.c.b16 %v606, %v606
        %v639 = vpack.c.b16 %v607, %v607
        %v640 = vpack.c.b16 %v608, %v608
        %v641 = vpack.c.b16 %v609, %v609
        %v642 = vpack.c.b16 %v610, %v610
        %v643 = vpack.c.b16 %v611, %v611
        %v644 = vpack.c.b16 %v612, %v612
        %v645 = vpack.c.b16 %v613, %v613
        %v646 = vpack.c.b16 %v614, %v614
        %v647 = vpack.c.b16 %v615, %v615
        %v648 = vpack.c.b16 %v616, %v616
        %v649 = vpack.c.b16 %v617, %v617
        %v650 = vpack.c.b16 %v618, %v618
        %v651 = vpack.c.b16 %v619, %v619
        %v652 = vpack.c.b16 %v620, %v620
        %v653 = vpack.c.b16 %v621, %v621
        %v654 = vpack.c.b16 %v622, %v622
        %v655 = vpack.c.b16 %v623, %v623
        %v656 = vpack.c.b16 %v624, %v624
        %v657 = vpack.c.b16 %v625, %v625
        %690 = vst [vmem:[%s164] sm:$0xf] %v626
        %691 = vst [vmem:[%s164 + $0x4] sm:$0xf] %v627
        %692 = vst [vmem:[%s164 + $0x8] sm:$0xf] %v628
        %693 = vst [vmem:[%s164 + $0xc] sm:$0xf] %v629
        %694 = vst [vmem:[%s164 + $0x10] sm:$0xf] %v630
        %695 = vst [vmem:[%s164 + $0x14] sm:$0xf] %v631
        %696 = vst [vmem:[%s164 + $0x18] sm:$0xf] %v632
        %697 = vst [vmem:[%s164 + $0x1c] sm:$0xf] %v633
        %698 = vst [vmem:[%s164 + $0x20] sm:$0xf] %v634
        %699 = vst [vmem:[%s164 + $0x24] sm:$0xf] %v635
        %700 = vst [vmem:[%s164 + $0x28] sm:$0xf] %v636
        %701 = vst [vmem:[%s164 + $0x2c] sm:$0xf] %v637
        %702 = vst [vmem:[%s164 + $0x30] sm:$0xf] %v638
        %703 = vst [vmem:[%s164 + $0x34] sm:$0xf] %v639
        %704 = vst [vmem:[%s164 + $0x38] sm:$0xf] %v640
        %705 = vst [vmem:[%s164 + $0x3c] sm:$0xf] %v641
        %706 = vst [vmem:[%s164 + $0x40] sm:$0xf] %v642
        %707 = vst [vmem:[%s164 + $0x44] sm:$0xf] %v643
        %708 = vst [vmem:[%s164 + $0x48] sm:$0xf] %v644
        %709 = vst [vmem:[%s164 + $0x4c] sm:$0xf] %v645
        %710 = vst [vmem:[%s164 + $0x50] sm:$0xf] %v646
        %711 = vst [vmem:[%s164 + $0x54] sm:$0xf] %v647
        %712 = vst [vmem:[%s164 + $0x58] sm:$0xf] %v648
        %713 = vst [vmem:[%s164 + $0x5c] sm:$0xf] %v649
        %714 = vst [vmem:[%s164 + $0x60] sm:$0xf] %v650
        %715 = vst [vmem:[%s164 + $0x64] sm:$0xf] %v651
        %716 = vst [vmem:[%s164 + $0x68] sm:$0xf] %v652
        %717 = vst [vmem:[%s164 + $0x6c] sm:$0xf] %v653
        %718 = vst [vmem:[%s164 + $0x70] sm:$0xf] %v654
        %719 = vst [vmem:[%s164 + $0x74] sm:$0xf] %v655
        %720 = vst [vmem:[%s164 + $0x78] sm:$0xf] %v656
        %721 = vst [vmem:[%s164 + $0x7c] sm:$0xf] %v657
        %s722 = sand.u32 %s90, 1
        %s723 = scalar_lea.sflag [#allocation3], %s722
        %s724 = sand.u32 %s90, 1
        %s725 = smul.addr %s724, 128
        %s726 = scalar_lea.vmem [#allocation2], %s725
        // Predicated region
        $region29: #{_conv2d_impl.1} parent=27 // pred_check
          %p727 = pneg %p100
        $region30: #{_conv2d_impl.1} parent=27 // pred_check_branch
          %729 = sbr.rel (%p727) target = $region32
        $region31: #{_conv2d_impl.1} parent=27 // pred_region
          %s730 = smul.u32 32, %s20
          %s732 = ssub.s32 2048, 2048
          %733 = vsyncadd %s723, %s732
          %s734 = sadd.s32 %s21, %s730
          %s735 = smul.addr %s734, 64
          %s736 = scalar_lea.hbm %s2, %s735
          %s737 = sshll.u32 %s726, 4
          %s738 = int_to_ptr.vmem [resolvable:$true] %s737
          %743 = dma.vmem_to_hbm [thread:$0]  %s738, 2048, %s736, %s723, 64, 64, 4
        $region32: #{_conv2d_impl.1} parent=27 // pred_fallthru
          _
      $region28: #{_conv2d_impl.1} parent=5 // pred_fallthru
        _
      %p744 = scmp.le.s32.totalorder 2, %s11
      // Predicated region
      $region33: #{_conv2d_impl.1} parent=5 // pred_check
        %p745 = pneg %p744
      $region34: #{_conv2d_impl.1} parent=5 // pred_check_branch
        %747 = sbr.rel (%p745) target = $region36
      $region35: #{_conv2d_impl.1} parent=5 // pred_region
        %s748 = ssub.s32 %s11, 2
        // Predicated region
        $region37: #{_conv2d_impl.1} parent=35 // pred_check
          %p749 = pneg %p106
        $region38: #{_conv2d_impl.1} parent=35 // pred_check_branch
          %751 = sbr.rel (%p749) target = $region40
        $region39: #{_conv2d_impl.1} parent=35 // pred_region
          %s752 = sand.u32 %s91, 1
          %s753 = scalar_lea.sflag [#allocation3], %s752
          %s754 = sand.u32 %s91, 1
          %s755 = smul.addr %s754, 128
          %s756 = scalar_lea.vmem [#allocation2], %s755
          %757 = dma.done %s753, 2048
        $region40: #{_conv2d_impl.1} parent=35 // pred_fallthru
          _
      $region36: #{_conv2d_impl.1} parent=5 // pred_fallthru
        _
    $region6: #{_conv2d_impl.1} parent=1 // loop_footer
      %s15 = sadd.s32 1, %s11
    $region7: #{_conv2d_impl.1} parent=1 // loop_footer_branch
      %10 = sbr.rel target = $region3
    $region8: #{_conv2d_impl.1} parent=1 // loop_exit
      _
    %758 = vsyncpa [#allocation3], 1
    %s759 = scalar_lea.sflag [#allocation3], 1
    %760 = vsyncpa %s759, 1

</llo_original>
